<compile_context>
chip_gen: v5e
topology: v5e:2x2
jax: 0.10.0
libtpu: 0.0.40
codegen_flags: <defaults>
</compile_context>

<pallas_src>
import functools

import jax
import jax.numpy as jnp
from jax.experimental import pallas as pl
from jax.experimental.pallas import tpu as pltpu


def _autoencoder_kernel(x_ref, we_ref, be_ref, wd_ref, bd_ref, o_ref):
    # ---- encoder: h = relu(x @ We + be) ----
    # Cast x to bf16 in-kernel (free-ish VPU work hidden under DMA/MXU);
    # accumulate in f32 on the MXU.
    x = x_ref[...].astype(jnp.bfloat16)
    h = jnp.dot(x, we_ref[...], preferred_element_type=jnp.float32)
    h = jnp.maximum(h + be_ref[...], 0.0)          # f32 bias + ReLU (VPU)

    # ---- decoder: y = sigmoid(h @ Wd + bd) ----
    y = jnp.dot(h.astype(wd_ref.dtype), wd_ref[...],
                preferred_element_type=jnp.float32)
    y = jax.nn.sigmoid(y + bd_ref[...])            # exp/recip on EUP, f32

    o_ref[...] = y.astype(o_ref.dtype)


def _choose_batch_tile(batch, block_b):
    """Pick (tb, nb): tb multiple of 8 (or == batch), nb even when > 1."""
    if batch <= block_b:
        return batch, 1                     # single full-batch tile
    nb = pl.cdiv(batch, block_b)
    if nb > 1 and nb % 2 == 1:
        nb += 1                             # even tile count -> balanced on v7x
    tb = -(-batch // nb)                    # ceil
    tb = -(-tb // 8) * 8                    # round up to sublane multiple
    nb = pl.cdiv(batch, tb)
    return tb, nb


def autoencoder_forward(x, w_enc, b_enc, w_dec, b_dec, *,
                        block_b=512, out_dtype=jnp.bfloat16):
    """Fused autoencoder forward.

    x: [B, D]; w_enc: [D, H]; b_enc: [H] or [1, H]; w_dec: [H, D];
    b_dec: [D] or [1, D]. Weights are stored [in, out] so the kernel computes
    x @ W + b (equivalent to PyTorch's x @ W.T). Returns [B, D] in out_dtype
    (bf16 by default; cast in the consumer if f32 is needed).
    """
    B, D = x.shape
    H = w_enc.shape[-1]

    # No-ops if the caller already holds bf16 weights / f32 2-D biases.
    we = w_enc.astype(jnp.bfloat16)
    wd = w_dec.astype(jnp.bfloat16)
    be = b_enc.astype(jnp.float32).reshape(1, H)
    bd = b_dec.astype(jnp.float32).reshape(1, D)

    tb, nb = _choose_batch_tile(B, block_b)
    out_isize = jnp.dtype(out_dtype).itemsize
    x_isize = jnp.dtype(x.dtype).itemsize

    cost = pl.CostEstimate(
        flops=4 * B * D * H,                       # two matmuls
        transcendentals=B * D,                     # sigmoid exp
        bytes_accessed=(B * D * x_isize            # x read
                        + we.size * 2 + wd.size * 2
                        + be.size * 4 + bd.size * 4
                        + B * D * out_isize),      # output write
    )

    return pl.pallas_call(
        _autoencoder_kernel,
        out_shape=jax.ShapeDtypeStruct((B, D), out_dtype),
        grid_spec=pltpu.PrefetchScalarGridSpec(
            num_scalar_prefetch=0,
            grid=(nb,),
            in_specs=[
                # x tile: new block each step (double-buffered by Pallas).
                # Last tile may be partial: OOB rows hold undefined data but
                # only feed OOB output rows, which are masked on store.
                pl.BlockSpec((tb, D), lambda i: (i, 0)),
                # Weights / biases: same block every step -> VMEM resident.
                pl.BlockSpec((D, H), lambda i: (0, 0)),
                pl.BlockSpec((1, H), lambda i: (0, 0)),
                pl.BlockSpec((H, D), lambda i: (0, 0)),
                pl.BlockSpec((1, D), lambda i: (0, 0)),
            ],
            out_specs=pl.BlockSpec((tb, D), lambda i: (i, 0)),
        ),
        compiler_params=pltpu.CompilerParams(
            # Batch tiles are independent -> shard across v7x's 2 TensorCores.
            dimension_semantics=("parallel",),
            # Small footprint at these shapes; within v7x's 64 MiB physical
            # VMEM. (If D/H are scaled until resident weights no longer fit,
            # switch to a K-tiled grid with an f32 VMEM accumulator.)
            vmem_limit_bytes=32 * 1024 * 1024,
        ),
        cost_estimate=cost,
    )(x, we, be, wd, bd)


def _reference_bf16(x, w_enc, b_enc, w_dec, b_dec):
    # Mirrors the kernel arithmetic: bf16 matmul operands, f32 accumulation,
    # f32 bias/activation.
    xb = x.astype(jnp.bfloat16)
    we = w_enc.astype(jnp.bfloat16)
    wd = w_dec.astype(jnp.bfloat16)
    h = jnp.maximum(
        jnp.dot(xb, we, preferred_element_type=jnp.float32) + b_enc, 0.0)
    y = jnp.dot(h.astype(jnp.bfloat16), wd,
                preferred_element_type=jnp.float32) + b_dec
    return jax.nn.sigmoid(y)


def _reference_f32(x, w_enc, b_enc, w_dec, b_dec):
    h = jnp.maximum(x @ w_enc + b_enc, 0.0)
    return jax.nn.sigmoid(h @ w_dec + b_dec)


if __name__ == "__main__":
    # Small shapes consistent with an MLP autoencoder on flattened inputs.
    # B=200 with block_b=128 gives two batch tiles (even -> balanced on v7x),
    # the second one partial -> exercises Pallas partial-block masking.
    B, D, H = 200, 256, 128

    key = jax.random.PRNGKey(0)
    k_x, k_we, k_be, k_wd, k_bd = jax.random.split(key, 5)

    x = jax.random.normal(k_x, (B, D), dtype=jnp.float32)

    # nn.Linear-style init: uniform in [-1/sqrt(fan_in), 1/sqrt(fan_in)].
    lim_e = 1.0 / (D ** 0.5)
    lim_d = 1.0 / (H ** 0.5)
    w_enc = jax.random.uniform(k_we, (D, H), minval=-lim_e, maxval=lim_e,
                               dtype=jnp.float32)
    b_enc = jax.random.uniform(k_be, (1, H), minval=-lim_e, maxval=lim_e,
                               dtype=jnp.float32)
    w_dec = jax.random.uniform(k_wd, (H, D), minval=-lim_d, maxval=lim_d,
                               dtype=jnp.float32)
    b_dec = jax.random.uniform(k_bd, (1, D), minval=-lim_d, maxval=lim_d,
                               dtype=jnp.float32)

    # Persist weights in bf16 once (no per-call cast traffic).
    w_enc_bf16 = w_enc.astype(jnp.bfloat16)
    w_dec_bf16 = w_dec.astype(jnp.bfloat16)

    fwd = functools.partial(autoencoder_forward, block_b=128)
    out = fwd(x, w_enc_bf16, b_enc, w_dec_bf16, b_dec)
    out = jax.block_until_ready(out)
    assert out.shape == (B, D)
    assert out.dtype == jnp.bfloat16

    out_f32 = out.astype(jnp.float32)

    # Check vs. a reference mirroring the kernel's bf16-operand/f32-accumulate
    # arithmetic (tolerance covers bf16 output rounding + reduction order).
    ref_bf16 = _reference_bf16(x, w_enc, b_enc, w_dec, b_dec)
    assert jnp.allclose(out_f32, ref_bf16, atol=1e-2, rtol=1e-2), \
        "mismatch vs bf16-operand reference"

    # Sanity check vs. the pure-f32 reference (loose: bf16 operand + output
    # rounding).
    ref_f32 = _reference_f32(x, w_enc, b_enc, w_dec, b_dec)
    assert jnp.allclose(out_f32, ref_f32, atol=3e-2, rtol=3e-2), \
        "mismatch vs f32 reference"

    print("KERNEL_OK")
</pallas_src>

<mosaic_0001>
module attributes {stable_mosaic.version = 11 : i64} {
  func.func @_autoencoder_kernel(%arg0: i32, %arg1: memref<104x256xf32, #tpu.memory_space<vmem>>, %arg2: memref<256x128xbf16, #tpu.memory_space<vmem>>, %arg3: memref<1x128xf32, #tpu.memory_space<vmem>>, %arg4: memref<128x256xbf16, #tpu.memory_space<vmem>>, %arg5: memref<1x256xf32, #tpu.memory_space<vmem>>, %arg6: memref<104x256xbf16, #tpu.memory_space<vmem>>) attributes {dimension_semantics = [#tpu.dimension_semantics<parallel>], iteration_bounds = array<i64: 2>, scalar_prefetch = 0 : i64, scratch_operands = 0 : i64, tpu.core_type = #tpu.core_type<tc>, window_params = [{transform_indices = @transform_0, window_bounds = array<i64: 104, 256>}, {pipeline_mode = #tpu.pipeline_mode<synchronous>, transform_indices = @transform_1, window_bounds = array<i64: 256, 128>}, {pipeline_mode = #tpu.pipeline_mode<synchronous>, transform_indices = @transform_2, window_bounds = array<i64: 1, 128>}, {pipeline_mode = #tpu.pipeline_mode<synchronous>, transform_indices = @transform_3, window_bounds = array<i64: 128, 256>}, {pipeline_mode = #tpu.pipeline_mode<synchronous>, transform_indices = @transform_4, window_bounds = array<i64: 1, 256>}, {transform_indices = @transform_5, window_bounds = array<i64: 104, 256>}]} {
    %c0 = arith.constant 0 : index
    %c0_0 = arith.constant 0 : index
    %0 = vector.load %arg1[%c0, %c0_0] : memref<104x256xf32, #tpu.memory_space<vmem>>, vector<104x256xf32>
    %1 = arith.truncf %0 : vector<104x256xf32> to vector<104x256xbf16>
    %c0_1 = arith.constant 0 : index
    %c0_2 = arith.constant 0 : index
    %2 = vector.load %arg2[%c0_1, %c0_2] : memref<256x128xbf16, #tpu.memory_space<vmem>>, vector<256x128xbf16>
    %cst = arith.constant dense<0.000000e+00> : vector<104x128xf32>
    %3 = tpu.matmul %1, %2, %cst {dimension_numbers = #tpu.dot_dimension_numbers<[1], [0], [0], [1], [0, 0, 1, 1], [], []>} : vector<104x256xbf16>, vector<256x128xbf16>, vector<104x128xf32> -> vector<104x128xf32>
    %c0_3 = arith.constant 0 : index
    %c0_4 = arith.constant 0 : index
    %4 = vector.load %arg3[%c0_3, %c0_4] : memref<1x128xf32, #tpu.memory_space<vmem>>, vector<1x128xf32>
    %5 = vector.broadcast %4 : vector<1x128xf32> to vector<104x128xf32>
    %6 = arith.addf %3, %5 : vector<104x128xf32>
    %cst_5 = arith.constant 0.000000e+00 : f32
    %7 = vector.broadcast %cst_5 : f32 to vector<104x128xf32>
    %8 = arith.maximumf %6, %7 : vector<104x128xf32>
    %9 = arith.truncf %8 : vector<104x128xf32> to vector<104x128xbf16>
    %c0_6 = arith.constant 0 : index
    %c0_7 = arith.constant 0 : index
    %10 = vector.load %arg4[%c0_6, %c0_7] : memref<128x256xbf16, #tpu.memory_space<vmem>>, vector<128x256xbf16>
    %cst_8 = arith.constant dense<0.000000e+00> : vector<104x256xf32>
    %11 = tpu.matmul %9, %10, %cst_8 {dimension_numbers = #tpu.dot_dimension_numbers<[1], [0], [0], [1], [0, 0, 1, 1], [], []>} : vector<104x128xbf16>, vector<128x256xbf16>, vector<104x256xf32> -> vector<104x256xf32>
    %c0_9 = arith.constant 0 : index
    %c0_10 = arith.constant 0 : index
    %12 = vector.load %arg5[%c0_9, %c0_10] : memref<1x256xf32, #tpu.memory_space<vmem>>, vector<1x256xf32>
    %13 = vector.broadcast %12 : vector<1x256xf32> to vector<104x256xf32>
    %14 = arith.addf %11, %13 : vector<104x256xf32>
    %15 = arith.negf %14 : vector<104x256xf32>
    %16 = math.exp %15 : vector<104x256xf32>
    %cst_11 = arith.constant 1.000000e+00 : f32
    %17 = vector.broadcast %cst_11 : f32 to vector<104x256xf32>
    %18 = arith.addf %17, %16 : vector<104x256xf32>
    %19 = arith.divf %17, %18 : vector<104x256xf32>
    %20 = arith.truncf %19 : vector<104x256xf32> to vector<104x256xbf16>
    %c0_12 = arith.constant 0 : index
    %c0_13 = arith.constant 0 : index
    %21 = vector.load %arg6[%c0_12, %c0_13] : memref<104x256xbf16, #tpu.memory_space<vmem>>, vector<104x256xbf16>
    tpu.vector_store %arg6[%c0_12, %c0_13], %20 {strides = array<i32>} : memref<104x256xbf16, #tpu.memory_space<vmem>>, vector<104x256xbf16>,
    return
  }
  func.func @transform_0(%arg0: i32) -> (i32, i32) {
    %c0_i32 = arith.constant 0 : i32
    %c0_i32_0 = arith.constant 0 : i32
    return %arg0, %c0_i32 : i32, i32
  }
  func.func @transform_1(%arg0: i32) -> (i32, i32) {
    %c0_i32 = arith.constant 0 : i32
    %c0_i32_0 = arith.constant 0 : i32
    %c0_i32_1 = arith.constant 0 : i32
    return %c0_i32, %c0_i32_0 : i32, i32
  }
  func.func @transform_2(%arg0: i32) -> (i32, i32) {
    %c0_i32 = arith.constant 0 : i32
    %c0_i32_0 = arith.constant 0 : i32
    %c0_i32_1 = arith.constant 0 : i32
    return %c0_i32, %c0_i32_0 : i32, i32
  }
  func.func @transform_3(%arg0: i32) -> (i32, i32) {
    %c0_i32 = arith.constant 0 : i32
    %c0_i32_0 = arith.constant 0 : i32
    %c0_i32_1 = arith.constant 0 : i32
    return %c0_i32, %c0_i32_0 : i32, i32
  }
  func.func @transform_4(%arg0: i32) -> (i32, i32) {
    %c0_i32 = arith.constant 0 : i32
    %c0_i32_0 = arith.constant 0 : i32
    %c0_i32_1 = arith.constant 0 : i32
    return %c0_i32, %c0_i32_0 : i32, i32
  }
  func.func @transform_5(%arg0: i32) -> (i32, i32) {
    %c0_i32 = arith.constant 0 : i32
    %c0_i32_0 = arith.constant 0 : i32
    return %arg0, %c0_i32 : i32, i32
  }
}

</mosaic_0001>

<llo_original>
// kernel: tpu_custom_call.1
$region0: #{tpu_custom_call.1}
  #allocation0 [shape = 'u32[]', space=smem, size = 0x4, offset = 0x4, fixed_abs, tag = 'smem constant byte address 0x4 - core index']
  #allocation1 [shape = 'u32[72,128]{1,0:T(1,128)}', space=vmem, size = 0x9000, scoped, tag = 'internal scratch']
  %s0 = inlined_call_operand.hbm [shape: f32[200,256], index: 0, kind: input, shape index: {}]
  %s1 = inlined_call_operand.hbm [shape: bf16[256,128], index: 1, kind: input, shape index: {}]
  %s2 = inlined_call_operand.vmem [shape: f32[1,128], index: 2, kind: input, shape index: {}]
  %s3 = inlined_call_operand.hbm [shape: bf16[128,256], index: 3, kind: input, shape index: {}]
  %s4 = inlined_call_operand.vmem [shape: f32[1,256], index: 4, kind: input, shape index: {}]
  %s5 = inlined_call_operand.hbm [shape: bf16[200,256], index: 5, kind: output, shape index: {}]
  %s6 = sld [smem:[#allocation0]]
  $region65: #{tpu_custom_call.1} parent=0
    _
  %s8 = ssub.s32 1, %s6
  %s9 = scalar_select 0, %s8, %s6
  $region1: #{tpu_custom_call.1} parent=0
    #allocation2 [shape = 'u8[212992]{0}', space=vmem, size = 0x34000, scoped, tag = 'input window, operand 0']
    #allocation3 [shape = 's32[2]{0}', space=sflag, size = 0x8, scoped, tag = 'scoped memory for tpu_custom_call.1']
    #allocation4 [shape = 's32[2]{0}', space=sflag, size = 0x8, scoped, tag = 'scoped memory for tpu_custom_call.1']
    #allocation5 [shape = 'u8[65536]{0}', space=vmem, size = 0x10000, scoped, tag = 'input window, operand 1, single buffered']
    #allocation6 [shape = 's32[1]{0}', space=sflag, size = 0x4, scoped, tag = 'scoped memory for tpu_custom_call.1']
    #allocation7 [shape = 'u8[65536]{0}', space=vmem, size = 0x10000, scoped, tag = 'input window, operand 3, single buffered']
    #allocation8 [shape = 'u8[106496]{0}', space=vmem, size = 0x1a000, scoped, tag = 'output window, operand 0']
    %10 = vsyncpa [#allocation3], 0
    %s11 = scalar_lea.sflag [#allocation3], 1
    %12 = vsyncpa %s11, 0
    %13 = vsyncpa [#allocation6], 0
    %14 = vsyncpa [#allocation4], 0
    %s15 = scalar_lea.sflag [#allocation4], 1
    %16 = vsyncpa %s15, 0
    loop: start=0, step=1, limit=4
    $region2: #{tpu_custom_call.1} parent=1 // loop_pre_header
      _
    $region3: #{tpu_custom_call.1} parent=1 // loop_header
      %s18 = sphi 0, %s22
      %p19 = scmp.ge.s32.totalorder %s18, 4
      %s28 = sphi 0, %s30
      %s31 = sphi 0, %s28
      %s32 = sphi 0, %s31
      %s48 = sphi 0, %s32
      %s52 = sphi 0, %s52
      %s54 = sphi 0, %s52
      %s55 = sphi 0, %s54
      %s69 = sphi 0, %s55
      %s73 = sphi 0, %s73
      %s75 = sphi 0, %s73
      %s76 = sphi 0, %s75
      %s90 = sphi 0, %s76
      %s94 = sphi 0, %s94
      %s96 = sphi 0, %s94
      %s97 = sphi 0, %s96
      %s111 = sphi 0, %s97
      %s115 = sphi 0, %s115
      %s117 = sphi 0, %s115
      %s118 = sphi 0, %s117
      %s132 = sphi 0, %s118
      %s138 = sphi 0, %s140
      %s141 = sphi 0, %s138
      %s142 = sphi 0, %s141
      %s158 = sphi 0, %s142
    $region4: #{tpu_custom_call.1} parent=1 // loop_header_branch
      %21 = sbr.rel (%p19) target = $region8
    $region5: #{tpu_custom_call.1} parent=1 // loop_body
      %s23 = ssub.s32 %s18, 1
      %s24 = ssub.s32 %s18, 2
      %s25 = sadd.s32 %s18, 1
      %s26 = ssub.s32 %s18, %s25
      %p27 = scmp.eq.s32.totalorder %s26, 0
      %s29 = sadd.s32 %s28, 1
      %s30 = scalar_select %p27, %s28, %s29
      %p33 = pneg %p27
      %p34 = scmp.eq.s32.totalorder %s18, 1
      %p35 = por %p33, %p34
      %p36 = scmp.ne.s32.totalorder %s28, %s31
      %p37 = scmp.eq.s32.totalorder %s18, 0
      %p38 = por %p36, %p37
      %p39 = scmp.ne.s32.totalorder %s28, %s31
      %p40 = scmp.eq.s32.totalorder %s23, 1
      %p41 = por %p39, %p40
      %p42 = scmp.ne.s32.totalorder %s31, %s32
      %p43 = scmp.eq.s32.totalorder %s23, 0
      %p44 = por %p42, %p43
      %p45 = scmp.ne.s32.totalorder %s31, %s32
      %p46 = scmp.eq.s32.totalorder %s24, 1
      %p47 = por %p45, %p46
      %p49 = scmp.ne.s32.totalorder %s32, %s48
      %p50 = scmp.eq.s32.totalorder %s24, 0
      %p51 = por %p49, %p50
      %s53 = sadd.s32 %s52, 1
      %p56 = scmp.eq.s32.totalorder %s18, 1
      %p57 = scmp.ne.s32.totalorder %s52, %s54
      %p58 = scmp.eq.s32.totalorder %s18, 0
      %p59 = por %p57, %p58
      %p60 = scmp.ne.s32.totalorder %s52, %s54
      %p61 = scmp.eq.s32.totalorder %s23, 1
      %p62 = por %p60, %p61
      %p63 = scmp.ne.s32.totalorder %s54, %s55
      %p64 = scmp.eq.s32.totalorder %s23, 0
      %p65 = por %p63, %p64
      %p66 = scmp.ne.s32.totalorder %s54, %s55
      %p67 = scmp.eq.s32.totalorder %s24, 1
      %p68 = por %p66, %p67
      %p70 = scmp.ne.s32.totalorder %s55, %s69
      %p71 = scmp.eq.s32.totalorder %s24, 0
      %p72 = por %p70, %p71
      %s74 = sadd.s32 %s73, 1
      %p77 = scmp.eq.s32.totalorder %s18, 1
      %p78 = scmp.ne.s32.totalorder %s73, %s75
      %p79 = scmp.eq.s32.totalorder %s18, 0
      %p80 = por %p78, %p79
      %p81 = scmp.ne.s32.totalorder %s73, %s75
      %p82 = scmp.eq.s32.totalorder %s23, 1
      %p83 = por %p81, %p82
      %p84 = scmp.ne.s32.totalorder %s75, %s76
      %p85 = scmp.eq.s32.totalorder %s23, 0
      %p86 = por %p84, %p85
      %p87 = scmp.ne.s32.totalorder %s75, %s76
      %p88 = scmp.eq.s32.totalorder %s24, 1
      %p89 = por %p87, %p88
      %p91 = scmp.ne.s32.totalorder %s76, %s90
      %p92 = scmp.eq.s32.totalorder %s24, 0
      %p93 = por %p91, %p92
      %s95 = sadd.s32 %s94, 1
      %p98 = scmp.eq.s32.totalorder %s18, 1
      %p99 = scmp.ne.s32.totalorder %s94, %s96
      %p100 = scmp.eq.s32.totalorder %s18, 0
      %p101 = por %p99, %p100
      %p102 = scmp.ne.s32.totalorder %s94, %s96
      %p103 = scmp.eq.s32.totalorder %s23, 1
      %p104 = por %p102, %p103
      %p105 = scmp.ne.s32.totalorder %s96, %s97
      %p106 = scmp.eq.s32.totalorder %s23, 0
      %p107 = por %p105, %p106
      %p108 = scmp.ne.s32.totalorder %s96, %s97
      %p109 = scmp.eq.s32.totalorder %s24, 1
      %p110 = por %p108, %p109
      %p112 = scmp.ne.s32.totalorder %s97, %s111
      %p113 = scmp.eq.s32.totalorder %s24, 0
      %p114 = por %p112, %p113
      %s116 = sadd.s32 %s115, 1
      %p119 = scmp.eq.s32.totalorder %s18, 1
      %p120 = scmp.ne.s32.totalorder %s115, %s117
      %p121 = scmp.eq.s32.totalorder %s18, 0
      %p122 = por %p120, %p121
      %p123 = scmp.ne.s32.totalorder %s115, %s117
      %p124 = scmp.eq.s32.totalorder %s23, 1
      %p125 = por %p123, %p124
      %p126 = scmp.ne.s32.totalorder %s117, %s118
      %p127 = scmp.eq.s32.totalorder %s23, 0
      %p128 = por %p126, %p127
      %p129 = scmp.ne.s32.totalorder %s117, %s118
      %p130 = scmp.eq.s32.totalorder %s24, 1
      %p131 = por %p129, %p130
      %p133 = scmp.ne.s32.totalorder %s118, %s132
      %p134 = scmp.eq.s32.totalorder %s24, 0
      %p135 = por %p133, %p134
      %s136 = ssub.s32 %s18, %s25
      %p137 = scmp.eq.s32.totalorder %s136, 0
      %s139 = sadd.s32 %s138, 1
      %s140 = scalar_select %p137, %s138, %s139
      %p143 = pneg %p137
      %p144 = scmp.eq.s32.totalorder %s18, 1
      %p145 = por %p143, %p144
      %p146 = scmp.ne.s32.totalorder %s138, %s141
      %p147 = scmp.eq.s32.totalorder %s18, 0
      %p148 = por %p146, %p147
      %p149 = scmp.ne.s32.totalorder %s138, %s141
      %p150 = scmp.eq.s32.totalorder %s23, 1
      %p151 = por %p149, %p150
      %p152 = scmp.ne.s32.totalorder %s141, %s142
      %p153 = scmp.eq.s32.totalorder %s23, 0
      %p154 = por %p152, %p153
      %p155 = scmp.ne.s32.totalorder %s141, %s142
      %p156 = scmp.eq.s32.totalorder %s24, 1
      %p157 = por %p155, %p156
      %p159 = scmp.ne.s32.totalorder %s142, %s158
      %p160 = scmp.eq.s32.totalorder %s24, 0
      %p161 = por %p159, %p160
      %p162 = scmp.le.s32.totalorder 1, %s18
      %p163 = scmp.lt.s32.totalorder %s18, 3
      %p164 = pnand %p162, %p163
      %p165 = pneg %p164
      // Predicated region
      $region9: #{tpu_custom_call.1} parent=5 // pred_check
        _
      $region10: #{tpu_custom_call.1} parent=5 // pred_check_branch
        %167 = sbr.rel (%p164) target = $region12
      $region11: #{tpu_custom_call.1} parent=5 // pred_region
        %s168 = ssub.s32 %s18, 1
        // Predicated region
        $region13: #{tpu_custom_call.1} parent=11 // pred_check
          %p169 = pneg %p65
        $region14: #{tpu_custom_call.1} parent=11 // pred_check_branch
          %171 = sbr.rel (%p169) target = $region16
        $region15: #{tpu_custom_call.1} parent=11 // pred_region
          %173 = vsyncadd [#allocation6], 0
          %s174 = sshll.u32 %s1, 4
          %s175 = int_to_ptr.hbm [resolvable:$true] %s174
          %s176 = sshll.u32 [#allocation5], 4
          %s177 = int_to_ptr.vmem [resolvable:$true] %s176
          %182 = dma.hbm_to_vmem [thread:$0]  %s175, 2048, %s177, [#allocation6], 64, 64, 4
        $region16: #{tpu_custom_call.1} parent=11 // pred_fallthru
          _
        // Predicated region
        $region17: #{tpu_custom_call.1} parent=11 // pred_check
          %p183 = pneg %p86
        $region18: #{tpu_custom_call.1} parent=11 // pred_check_branch
          %185 = sbr.rel (%p183) target = $region20
        $region19: #{tpu_custom_call.1} parent=11 // pred_region
          _
        $region20: #{tpu_custom_call.1} parent=11 // pred_fallthru
          _
        // Predicated region
        $region21: #{tpu_custom_call.1} parent=11 // pred_check
          %p186 = pneg %p107
        $region22: #{tpu_custom_call.1} parent=11 // pred_check_branch
          %188 = sbr.rel (%p186) target = $region24
        $region23: #{tpu_custom_call.1} parent=11 // pred_region
          %190 = vsyncadd [#allocation6], 0
          %s191 = sshll.u32 %s3, 4
          %s192 = int_to_ptr.hbm [resolvable:$true] %s191
          %s193 = sshll.u32 [#allocation7], 4
          %s194 = int_to_ptr.vmem [resolvable:$true] %s193
          %199 = dma.hbm_to_vmem [thread:$0]  %s192, 2048, %s194, [#allocation6], 128, 128, 8
        $region24: #{tpu_custom_call.1} parent=11 // pred_fallthru
          _
        // Predicated region
        $region25: #{tpu_custom_call.1} parent=11 // pred_check
          %p200 = pneg %p128
        $region26: #{tpu_custom_call.1} parent=11 // pred_check_branch
          %202 = sbr.rel (%p200) target = $region28
        $region27: #{tpu_custom_call.1} parent=11 // pred_region
          _
        $region28: #{tpu_custom_call.1} parent=11 // pred_fallthru
          _
      $region12: #{tpu_custom_call.1} parent=5 // pred_fallthru
        _
      %p203 = scmp.lt.s32.totalorder %s18, 2
      // Predicated region
      $region29: #{tpu_custom_call.1} parent=5 // pred_check
        %p204 = pneg %p203
      $region30: #{tpu_custom_call.1} parent=5 // pred_check_branch
        %206 = sbr.rel (%p204) target = $region32
      $region31: #{tpu_custom_call.1} parent=5 // pred_region
        // Predicated region
        $region33: #{tpu_custom_call.1} parent=31 // pred_check
          %p207 = pneg %p38
        $region34: #{tpu_custom_call.1} parent=31 // pred_check_branch
          %209 = sbr.rel (%p207) target = $region36
        $region35: #{tpu_custom_call.1} parent=31 // pred_region
          %s210 = sand.u32 %s28, 1
          %s211 = scalar_lea.sflag [#allocation3], %s210
          %s212 = sand.u32 %s28, 1
          %s213 = smul.addr %s212, 208
          %s214 = scalar_lea.vmem [#allocation2], %s213
          %s215 = smul.u32 13, %s18
          %s216 = ssub.s32 25, %s215
          %p217 = scmp.lt.s32.totalorder %s216, 13
          %s218 = scalar_select %p217, %s216, 13
          %s219 = smul.u32 8, %s218
          %s220 = smul.u32 %s219, 2
          %s221 = ssub.s32 208, %s220
          %s222 = sshll.u32 %s221, 4
          %223 = vsyncadd %s211, %s222
          %p224 = scmp.ne.s32.totalorder 0, %s220
          %s225 = smul.addr %s215, 2
          %s226 = smul.addr %s225, 8
          %s227 = scalar_lea.hbm %s0, %s226
          %s228 = smul.u32 16, %s218
          %s229 = sshll.u32 %s227, 4
          %s230 = int_to_ptr.hbm [resolvable:$true] %s229
          %s231 = sshll.u32 %s214, 4
          %s232 = int_to_ptr.vmem [resolvable:$true] %s231
          %s233 = sshll.u32 %s228, 4
          %237 = dma.hbm_to_vmem [thread:$0]  (%p224), %s230, %s233, %s232, %s211, 256, 256, 16
        $region36: #{tpu_custom_call.1} parent=31 // pred_fallthru
          _
      $region32: #{tpu_custom_call.1} parent=5 // pred_fallthru
        _
      %p238 = scmp.le.s32.totalorder 1, %s18
      %p239 = scmp.lt.s32.totalorder %s18, 3
      %p240 = pnand %p238, %p239
      %p241 = pneg %p240
      // Predicated region
      $region37: #{tpu_custom_call.1} parent=5 // pred_check
        _
      $region38: #{tpu_custom_call.1} parent=5 // pred_check_branch
        %243 = sbr.rel (%p240) target = $region40
      $region39: #{tpu_custom_call.1} parent=5 // pred_region
        %s244 = ssub.s32 %s18, 1
        %s245 = sand.u32 %s31, 1
        %s246 = scalar_lea.sflag [#allocation3], %s245
        %s247 = sand.u32 %s31, 1
        %s248 = smul.addr %s247, 208
        %s249 = scalar_lea.vmem [#allocation2], %s248
        // Predicated region
        $region41: #{tpu_custom_call.1} parent=39 // pred_check
          %p250 = pneg %p44
        $region42: #{tpu_custom_call.1} parent=39 // pred_check_branch
          %252 = sbr.rel (%p250) target = $region44
        $region43: #{tpu_custom_call.1} parent=39 // pred_region
          %254 = dma.done %s246, 3328
        $region44: #{tpu_custom_call.1} parent=39 // pred_fallthru
          _
        // Predicated region
        $region45: #{tpu_custom_call.1} parent=39 // pred_check
          %p255 = pneg %p65
        $region46: #{tpu_custom_call.1} parent=39 // pred_check_branch
          %257 = sbr.rel (%p255) target = $region48
        $region47: #{tpu_custom_call.1} parent=39 // pred_region
          %259 = dma.done [#allocation6], 2048
        $region48: #{tpu_custom_call.1} parent=39 // pred_fallthru
          _
        // Predicated region
        $region49: #{tpu_custom_call.1} parent=39 // pred_check
          %p260 = pneg %p107
        $region50: #{tpu_custom_call.1} parent=39 // pred_check_branch
          %262 = sbr.rel (%p260) target = $region52
        $region51: #{tpu_custom_call.1} parent=39 // pred_region
          %264 = dma.done [#allocation6], 2048
        $region52: #{tpu_custom_call.1} parent=39 // pred_fallthru
          _
        %s265 = sand.u32 %s31, 1
        %s266 = scalar_lea.sflag [#allocation3], %s265
        %s267 = sand.u32 %s31, 1
        %s268 = smul.addr %s267, 208
        %s269 = scalar_lea.vmem [#allocation2], %s268
        %p270 = pneg %p44
        %p271 = pneg %p41
        %p272 = pneg %p65
        %p273 = pneg %p62
        %p274 = pneg %p86
        %p275 = pneg %p83
        %p276 = pneg %p107
        %p277 = pneg %p104
        %p278 = pneg %p128
        %p279 = pneg %p125
        %p280 = pneg %p154
        %p281 = pneg %p151
        %s282 = sand.u32 %s141, 1
        %s283 = scalar_lea.sflag [#allocation4], %s282
        %s284 = sand.u32 %s141, 1
        %s285 = smul.addr %s284, 104
        %s286 = scalar_lea.vmem [#allocation8], %s285
        %s287 = smul.u32 13, %s23
        %s288 = ssub.s32 25, %s287
        %p289 = scmp.lt.s32.totalorder %s288, 13
        %s290 = scalar_select %p289, %s288, 13
        %s291 = smul.u32 8, %s290
        %s292 = smul.u32 %s291, 2
        %s293 = smul.u32 13, %s23
        %s294 = ssub.s32 25, %s293
        %p295 = scmp.lt.s32.totalorder %s294, 13
        %s296 = scalar_select %p295, %s294, 13
        %s297 = smul.u32 4, %s296
        %s298 = smul.u32 %s297, 2
        %v299 = vld [vmem:[%s249] sm:$0xff]
        %v300 = vld [vmem:[%s249 + $0x8] sm:$0xff]
        %v301 = vld [vmem:[%s249 + $0x10] sm:$0xff]
        %v302 = vld [vmem:[%s249 + $0x18] sm:$0xff]
        %v303 = vld [vmem:[%s249 + $0x20] sm:$0xff]
        %v304 = vld [vmem:[%s249 + $0x28] sm:$0xff]
        %v305 = vld [vmem:[%s249 + $0x30] sm:$0xff]
        %v306 = vld [vmem:[%s249 + $0x38] sm:$0xff]
        %v307 = vld [vmem:[%s249 + $0x40] sm:$0xff]
        %v308 = vld [vmem:[%s249 + $0x48] sm:$0xff]
        %v309 = vld [vmem:[%s249 + $0x50] sm:$0xff]
        %v310 = vld [vmem:[%s249 + $0x58] sm:$0xff]
        %v311 = vld [vmem:[%s249 + $0x60] sm:$0xff]
        %v312 = vld [vmem:[%s249 + $0x68] sm:$0xff]
        %v313 = vld [vmem:[%s249 + $0x70] sm:$0xff]
        %v314 = vld [vmem:[%s249 + $0x78] sm:$0xff]
        %v315 = vld [vmem:[%s249 + $0x80] sm:$0xff]
        %v316 = vld [vmem:[%s249 + $0x88] sm:$0xff]
        %v317 = vld [vmem:[%s249 + $0x90] sm:$0xff]
        %v318 = vld [vmem:[%s249 + $0x98] sm:$0xff]
        %v319 = vld [vmem:[%s249 + $0xa0] sm:$0xff]
        %v320 = vld [vmem:[%s249 + $0xa8] sm:$0xff]
        %v321 = vld [vmem:[%s249 + $0xb0] sm:$0xff]
        %v322 = vld [vmem:[%s249 + $0xb8] sm:$0xff]
        %v323 = vld [vmem:[%s249 + $0xc0] sm:$0xff]
        %v324 = vld [vmem:[%s249 + $0xc8] sm:$0xff]
        %v325 = vpack.c.bf16 %v301, %v299
        %v326 = vpack.c.bf16 %v302, %v300
        %v327 = vpack.c.bf16 %v305, %v303
        %v328 = vpack.c.bf16 %v306, %v304
        %v329 = vpack.c.bf16 %v309, %v307
        %v330 = vpack.c.bf16 %v310, %v308
        %v331 = vpack.c.bf16 %v313, %v311
        %v332 = vpack.c.bf16 %v314, %v312
        %v333 = vpack.c.bf16 %v317, %v315
        %v334 = vpack.c.bf16 %v318, %v316
        %v335 = vpack.c.bf16 %v321, %v319
        %v336 = vpack.c.bf16 %v322, %v320
        %v337 = vpack.c.bf16 %v323, %v323
        %v338 = vpack.c.bf16 %v324, %v324
        %v339 = vld [vmem:[#allocation5] sm:$0xf]
        %v340 = vld [vmem:[#allocation5 + $0x4] sm:$0xf]
        %v341 = vld [vmem:[#allocation5 + $0x8] sm:$0xf]
        %v342 = vld [vmem:[#allocation5 + $0xc] sm:$0xf]
        %v343 = vld [vmem:[#allocation5 + $0x10] sm:$0xf]
        %v344 = vld [vmem:[#allocation5 + $0x14] sm:$0xf]
        %v345 = vld [vmem:[#allocation5 + $0x18] sm:$0xf]
        %v346 = vld [vmem:[#allocation5 + $0x1c] sm:$0xf]
        %v347 = vld [vmem:[#allocation5 + $0x20] sm:$0xf]
        %v348 = vld [vmem:[#allocation5 + $0x24] sm:$0xf]
        %v349 = vld [vmem:[#allocation5 + $0x28] sm:$0xf]
        %v350 = vld [vmem:[#allocation5 + $0x2c] sm:$0xf]
        %v351 = vld [vmem:[#allocation5 + $0x30] sm:$0xf]
        %v352 = vld [vmem:[#allocation5 + $0x34] sm:$0xf]
        %v353 = vld [vmem:[#allocation5 + $0x38] sm:$0xf]
        %v354 = vld [vmem:[#allocation5 + $0x3c] sm:$0xf]
        %v355 = vld [vmem:[#allocation5 + $0x40] sm:$0xf]
        %v356 = vld [vmem:[#allocation5 + $0x44] sm:$0xf]
        %v357 = vld [vmem:[#allocation5 + $0x48] sm:$0xf]
        %v358 = vld [vmem:[#allocation5 + $0x4c] sm:$0xf]
        %v359 = vld [vmem:[#allocation5 + $0x50] sm:$0xf]
        %v360 = vld [vmem:[#allocation5 + $0x54] sm:$0xf]
        %v361 = vld [vmem:[#allocation5 + $0x58] sm:$0xf]
        %v362 = vld [vmem:[#allocation5 + $0x5c] sm:$0xf]
        %v363 = vld [vmem:[#allocation5 + $0x60] sm:$0xf]
        %v364 = vld [vmem:[#allocation5 + $0x64] sm:$0xf]
        %v365 = vld [vmem:[#allocation5 + $0x68] sm:$0xf]
        %v366 = vld [vmem:[#allocation5 + $0x6c] sm:$0xf]
        %v367 = vld [vmem:[#allocation5 + $0x70] sm:$0xf]
        %v368 = vld [vmem:[#allocation5 + $0x74] sm:$0xf]
        %v369 = vld [vmem:[#allocation5 + $0x78] sm:$0xf]
        %v370 = vld [vmem:[#allocation5 + $0x7c] sm:$0xf]
        %v371 = vld [vmem:[%s2] sm:$0x1]
        %v373 = vperm.slane %v371, 0
        %v407 = vunpack.c.l.b16 %v339
        %v408 = vunpack.c.l.b16 %v340
        %v409 = vunpack.c.l.b16 %v341
        %v410 = vunpack.c.l.b16 %v342
        %v411 = vunpack.c.l.b16 %v343
        %v412 = vunpack.c.l.b16 %v344
        %v413 = vunpack.c.l.b16 %v345
        %v414 = vunpack.c.l.b16 %v346
        %v415 = vunpack.c.l.b16 %v347
        %v416 = vunpack.c.l.b16 %v348
        %v417 = vunpack.c.l.b16 %v349
        %v418 = vunpack.c.l.b16 %v350
        %v419 = vunpack.c.l.b16 %v351
        %v420 = vunpack.c.l.b16 %v352
        %v421 = vunpack.c.l.b16 %v353
        %v422 = vunpack.c.l.b16 %v354
        %v423 = vunpack.c.l.b16 %v355
        %v424 = vunpack.c.l.b16 %v356
        %v425 = vunpack.c.l.b16 %v357
        %v426 = vunpack.c.l.b16 %v358
        %v427 = vunpack.c.l.b16 %v359
        %v428 = vunpack.c.l.b16 %v360
        %v429 = vunpack.c.l.b16 %v361
        %v430 = vunpack.c.l.b16 %v362
        %v431 = vunpack.c.l.b16 %v363
        %v432 = vunpack.c.l.b16 %v364
        %v433 = vunpack.c.l.b16 %v365
        %v434 = vunpack.c.l.b16 %v366
        %v435 = vunpack.c.l.b16 %v367
        %v436 = vunpack.c.l.b16 %v368
        %v437 = vunpack.c.l.b16 %v369
        %v438 = vunpack.c.l.b16 %v370
        %v439 = vpack.c.b16 %v408, %v407
        %v440 = vpack.c.b16 %v410, %v409
        %v441 = vpack.c.b16 %v412, %v411
        %v442 = vpack.c.b16 %v414, %v413
        %v443 = vpack.c.b16 %v416, %v415
        %v444 = vpack.c.b16 %v418, %v417
        %v445 = vpack.c.b16 %v420, %v419
        %v446 = vpack.c.b16 %v422, %v421
        %v447 = vpack.c.b16 %v424, %v423
        %v448 = vpack.c.b16 %v426, %v425
        %v449 = vpack.c.b16 %v428, %v427
        %v450 = vpack.c.b16 %v430, %v429
        %v451 = vpack.c.b16 %v432, %v431
        %v452 = vpack.c.b16 %v434, %v433
        %v453 = vpack.c.b16 %v436, %v435
        %v454 = vpack.c.b16 %v438, %v437
        %471 = vmatpush.bf16.msra.mxu0 %v446
        %472 = vmatpush.bf16.msra.mxu0 %v445
        %473 = vmatpush.bf16.msra.mxu0 %v444
        %474 = vmatpush.bf16.msra.mxu0 %v443
        %475 = vmatpush.bf16.msra.mxu0 %v442
        %476 = vmatpush.bf16.msra.mxu0 %v441
        %477 = vmatpush.bf16.msra.mxu0 %v440
        %478 = vmatpush.bf16.msra.mxu0 %v439
        %479 = vmatmul.bf16.gmra.mxu0 %v325
        %v480 = vpop.f32.mrf.mxu0
        %v481 = vadd.f32 %v373, %v480
        %v482 = vpop.f32.mrf.mxu0
        %v483 = vadd.f32 %v373, %v482
        %484 = vmatmul.bf16.gmra.mxu0 %v327
        %v485 = vpop.f32.mrf.mxu0
        %v486 = vadd.f32 %v373, %v485
        %v487 = vpop.f32.mrf.mxu0
        %v488 = vadd.f32 %v373, %v487
        %489 = vmatmul.bf16.gmra.mxu0 %v329
        %v490 = vpop.f32.mrf.mxu0
        %v491 = vadd.f32 %v373, %v490
        %v492 = vpop.f32.mrf.mxu0
        %v493 = vadd.f32 %v373, %v492
        %494 = vmatmul.bf16.gmra.mxu0 %v331
        %v495 = vpop.f32.mrf.mxu0
        %v496 = vadd.f32 %v373, %v495
        %v497 = vpop.f32.mrf.mxu0
        %v498 = vadd.f32 %v373, %v497
        %499 = vmatmul.bf16.gmra.mxu0 %v333
        %v500 = vpop.f32.mrf.mxu0
        %v501 = vadd.f32 %v373, %v500
        %v502 = vpop.f32.mrf.mxu0
        %v503 = vadd.f32 %v373, %v502
        %504 = vmatmul.bf16.gmra.mxu0 %v335
        %v505 = vpop.f32.mrf.mxu0
        %v506 = vadd.f32 %v373, %v505
        %v507 = vpop.f32.mrf.mxu0
        %v508 = vadd.f32 %v373, %v507
        %509 = vmatmul.bf16.gmra.mxu0 %v337
        %v510 = vpop.f32.mrf.mxu0
        %v511 = vadd.f32 %v373, %v510
        %v512 = vpop.f32.mrf.mxu0
        %513 = vdwg.mxu0
        %514 = vmatpush.bf16.msra.mxu0 %v454
        %515 = vmatpush.bf16.msra.mxu0 %v453
        %516 = vmatpush.bf16.msra.mxu0 %v452
        %517 = vmatpush.bf16.msra.mxu0 %v451
        %518 = vmatpush.bf16.msra.mxu0 %v450
        %519 = vmatpush.bf16.msra.mxu0 %v449
        %520 = vmatpush.bf16.msra.mxu0 %v448
        %521 = vmatpush.bf16.msra.mxu0 %v447
        %522 = vmatmul.bf16.gmra.mxu0 %v326
        %v523 = vpop.f32.mrf.mxu0
        %v524 = vadd.f32 %v481, %v523
        %v525 = vpop.f32.mrf.mxu0
        %v526 = vadd.f32 %v483, %v525
        %527 = vmatmul.bf16.gmra.mxu0 %v328
        %v528 = vpop.f32.mrf.mxu0
        %v529 = vadd.f32 %v486, %v528
        %v530 = vpop.f32.mrf.mxu0
        %v531 = vadd.f32 %v488, %v530
        %532 = vmatmul.bf16.gmra.mxu0 %v330
        %v533 = vpop.f32.mrf.mxu0
        %v534 = vadd.f32 %v491, %v533
        %v535 = vpop.f32.mrf.mxu0
        %v536 = vadd.f32 %v493, %v535
        %537 = vmatmul.bf16.gmra.mxu0 %v332
        %v538 = vpop.f32.mrf.mxu0
        %v539 = vadd.f32 %v496, %v538
        %v540 = vpop.f32.mrf.mxu0
        %v541 = vadd.f32 %v498, %v540
        %542 = vmatmul.bf16.gmra.mxu0 %v334
        %v543 = vpop.f32.mrf.mxu0
        %v544 = vadd.f32 %v501, %v543
        %v545 = vpop.f32.mrf.mxu0
        %v546 = vadd.f32 %v503, %v545
        %547 = vmatmul.bf16.gmra.mxu0 %v336
        %v548 = vpop.f32.mrf.mxu0
        %v549 = vadd.f32 %v506, %v548
        %v550 = vpop.f32.mrf.mxu0
        %v551 = vadd.f32 %v508, %v550
        %552 = vmatmul.bf16.gmra.mxu0 %v338
        %v553 = vpop.f32.mrf.mxu0
        %v554 = vadd.f32 %v511, %v553
        %v555 = vpop.f32.mrf.mxu0
        %556 = vdwg.mxu0
        %v557 = vmax.f32 %v524, 0.0
        %v558 = vmax.f32 %v526, 0.0
        %v559 = vmax.f32 %v529, 0.0
        %v560 = vmax.f32 %v531, 0.0
        %v561 = vmax.f32 %v534, 0.0
        %v562 = vmax.f32 %v536, 0.0
        %v563 = vmax.f32 %v539, 0.0
        %v564 = vmax.f32 %v541, 0.0
        %v565 = vmax.f32 %v544, 0.0
        %v566 = vmax.f32 %v546, 0.0
        %v567 = vmax.f32 %v549, 0.0
        %v568 = vmax.f32 %v551, 0.0
        %v569 = vmax.f32 %v554, 0.0
        %v570 = vpack.c.bf16 %v558, %v557
        %v571 = vpack.c.bf16 %v560, %v559
        %v572 = vpack.c.bf16 %v562, %v561
        %v573 = vpack.c.bf16 %v564, %v563
        %v574 = vpack.c.bf16 %v566, %v565
        %v575 = vpack.c.bf16 %v568, %v567
        %v576 = vpack.c.bf16 %v569, %v569
        %v577 = vld [vmem:[#allocation7] sm:$0xff]
        %v578 = vld [vmem:[#allocation7 + $0x8] sm:$0xff]
        %v579 = vld [vmem:[#allocation7 + $0x10] sm:$0xff]
        %v580 = vld [vmem:[#allocation7 + $0x18] sm:$0xff]
        %v581 = vld [vmem:[#allocation7 + $0x20] sm:$0xff]
        %v582 = vld [vmem:[#allocation7 + $0x28] sm:$0xff]
        %v583 = vld [vmem:[#allocation7 + $0x30] sm:$0xff]
        %v584 = vld [vmem:[#allocation7 + $0x38] sm:$0xff]
        %v585 = vld [vmem:[#allocation7 + $0x40] sm:$0xff]
        %v586 = vld [vmem:[#allocation7 + $0x48] sm:$0xff]
        %v587 = vld [vmem:[#allocation7 + $0x50] sm:$0xff]
        %v588 = vld [vmem:[#allocation7 + $0x58] sm:$0xff]
        %v589 = vld [vmem:[#allocation7 + $0x60] sm:$0xff]
        %v590 = vld [vmem:[#allocation7 + $0x68] sm:$0xff]
        %v591 = vld [vmem:[#allocation7 + $0x70] sm:$0xff]
        %v592 = vld [vmem:[#allocation7 + $0x78] sm:$0xff]
        %v593 = vld [vmem:[%s4] sm:$0x3]
        %v595 = vperm.slane %v593, 0
        %v596 = vperm.slane %v593, 1
        %v615 = vunpack.c.l.b16 %v577
        %v616 = vunpack.c.h.b16 %v577
        %v617 = vunpack.c.l.b16 %v578
        %v618 = vunpack.c.h.b16 %v578
        %v619 = vunpack.c.l.b16 %v579
        %v620 = vunpack.c.h.b16 %v579
        %v621 = vunpack.c.l.b16 %v580
        %v622 = vunpack.c.h.b16 %v580
        %v623 = vunpack.c.l.b16 %v581
        %v624 = vunpack.c.h.b16 %v581
        %v625 = vunpack.c.l.b16 %v582
        %v626 = vunpack.c.h.b16 %v582
        %v627 = vunpack.c.l.b16 %v583
        %v628 = vunpack.c.h.b16 %v583
        %v629 = vunpack.c.l.b16 %v584
        %v630 = vunpack.c.h.b16 %v584
        %v631 = vunpack.c.l.b16 %v585
        %v632 = vunpack.c.h.b16 %v585
        %v633 = vunpack.c.l.b16 %v586
        %v634 = vunpack.c.h.b16 %v586
        %v635 = vunpack.c.l.b16 %v587
        %v636 = vunpack.c.h.b16 %v587
        %v637 = vunpack.c.l.b16 %v588
        %v638 = vunpack.c.h.b16 %v588
        %v639 = vunpack.c.l.b16 %v589
        %v640 = vunpack.c.h.b16 %v589
        %v641 = vunpack.c.l.b16 %v590
        %v642 = vunpack.c.h.b16 %v590
        %v643 = vunpack.c.l.b16 %v591
        %v644 = vunpack.c.h.b16 %v591
        %v645 = vunpack.c.l.b16 %v592
        %v646 = vunpack.c.h.b16 %v592
        %v647 = vpack.c.b16 %v617, %v615
        %v648 = vpack.c.b16 %v618, %v616
        %v649 = vpack.c.b16 %v621, %v619
        %v650 = vpack.c.b16 %v622, %v620
        %v651 = vpack.c.b16 %v625, %v623
        %v652 = vpack.c.b16 %v626, %v624
        %v653 = vpack.c.b16 %v629, %v627
        %v654 = vpack.c.b16 %v630, %v628
        %v655 = vpack.c.b16 %v633, %v631
        %v656 = vpack.c.b16 %v634, %v632
        %v657 = vpack.c.b16 %v637, %v635
        %v658 = vpack.c.b16 %v638, %v636
        %v659 = vpack.c.b16 %v641, %v639
        %v660 = vpack.c.b16 %v642, %v640
        %v661 = vpack.c.b16 %v645, %v643
        %v662 = vpack.c.b16 %v646, %v644
        %679 = vmatpush.bf16.msra.mxu0 %v661
        %680 = vmatpush.bf16.msra.mxu0 %v659
        %681 = vmatpush.bf16.msra.mxu0 %v657
        %682 = vmatpush.bf16.msra.mxu0 %v655
        %683 = vmatpush.bf16.msra.mxu0 %v653
        %684 = vmatpush.bf16.msra.mxu0 %v651
        %685 = vmatpush.bf16.msra.mxu0 %v649
        %686 = vmatpush.bf16.msra.mxu0 %v647
        %687 = vmatmul.bf16.gmra.mxu0 %v570
        %v688 = vpop.f32.mrf.mxu0
        %v689 = vadd.f32 %v595, %v688
        %v690 = vpop.f32.mrf.mxu0
        %v691 = vadd.f32 %v595, %v690
        %692 = vmatmul.bf16.gmra.mxu0 %v571
        %v693 = vpop.f32.mrf.mxu0
        %v694 = vadd.f32 %v595, %v693
        %v695 = vpop.f32.mrf.mxu0
        %v696 = vadd.f32 %v595, %v695
        %697 = vmatmul.bf16.gmra.mxu0 %v572
        %v698 = vpop.f32.mrf.mxu0
        %v699 = vadd.f32 %v595, %v698
        %v700 = vpop.f32.mrf.mxu0
        %v701 = vadd.f32 %v595, %v700
        %702 = vmatmul.bf16.gmra.mxu0 %v573
        %v703 = vpop.f32.mrf.mxu0
        %v704 = vadd.f32 %v595, %v703
        %v705 = vpop.f32.mrf.mxu0
        %v706 = vadd.f32 %v595, %v705
        %707 = vmatmul.bf16.gmra.mxu0 %v574
        %v708 = vpop.f32.mrf.mxu0
        %v709 = vadd.f32 %v595, %v708
        %v710 = vpop.f32.mrf.mxu0
        %v711 = vadd.f32 %v595, %v710
        %712 = vmatmul.bf16.gmra.mxu0 %v575
        %v713 = vpop.f32.mrf.mxu0
        %v714 = vadd.f32 %v595, %v713
        %v715 = vpop.f32.mrf.mxu0
        %v716 = vadd.f32 %v595, %v715
        %717 = vmatmul.bf16.gmra.mxu0 %v576
        %v718 = vpop.f32.mrf.mxu0
        %v719 = vadd.f32 %v595, %v718
        %v720 = vpop.f32.mrf.mxu0
        %721 = vdwg.mxu0
        %722 = vmatpush.bf16.msra.mxu0 %v662
        %723 = vmatpush.bf16.msra.mxu0 %v660
        %724 = vmatpush.bf16.msra.mxu0 %v658
        %725 = vmatpush.bf16.msra.mxu0 %v656
        %726 = vmatpush.bf16.msra.mxu0 %v654
        %727 = vmatpush.bf16.msra.mxu0 %v652
        %728 = vmatpush.bf16.msra.mxu0 %v650
        %729 = vmatpush.bf16.msra.mxu0 %v648
        %730 = vmatmul.bf16.gmra.mxu0 %v570
        %v731 = vpop.f32.mrf.mxu0
        %v732 = vadd.f32 %v596, %v731
        %v733 = vpop.f32.mrf.mxu0
        %v734 = vadd.f32 %v596, %v733
        %735 = vmatmul.bf16.gmra.mxu0 %v571
        %v736 = vpop.f32.mrf.mxu0
        %v737 = vadd.f32 %v596, %v736
        %v738 = vpop.f32.mrf.mxu0
        %v739 = vadd.f32 %v596, %v738
        %740 = vmatmul.bf16.gmra.mxu0 %v572
        %v741 = vpop.f32.mrf.mxu0
        %v742 = vadd.f32 %v596, %v741
        %v743 = vpop.f32.mrf.mxu0
        %v744 = vadd.f32 %v596, %v743
        %745 = vmatmul.bf16.gmra.mxu0 %v573
        %v746 = vpop.f32.mrf.mxu0
        %v747 = vadd.f32 %v596, %v746
        %v748 = vpop.f32.mrf.mxu0
        %v749 = vadd.f32 %v596, %v748
        %750 = vmatmul.bf16.gmra.mxu0 %v574
        %v751 = vpop.f32.mrf.mxu0
        %v752 = vadd.f32 %v596, %v751
        %v753 = vpop.f32.mrf.mxu0
        %v754 = vadd.f32 %v596, %v753
        %755 = vmatmul.bf16.gmra.mxu0 %v575
        %v756 = vpop.f32.mrf.mxu0
        %v757 = vadd.f32 %v596, %v756
        %v758 = vpop.f32.mrf.mxu0
        %v759 = vadd.f32 %v596, %v758
        %760 = vmatmul.bf16.gmra.mxu0 %v576
        %v761 = vpop.f32.mrf.mxu0
        %v762 = vadd.f32 %v596, %v761
        %v763 = vpop.f32.mrf.mxu0
        %764 = vdwg.mxu0
        %v765 = vxor.u32 %v689, 2147483648
        %v766 = vxor.u32 %v732, 2147483648
        %v767 = vxor.u32 %v691, 2147483648
        %v768 = vxor.u32 %v734, 2147483648
        %v769 = vxor.u32 %v694, 2147483648
        %v770 = vxor.u32 %v737, 2147483648
        %v771 = vxor.u32 %v696, 2147483648
        %v772 = vxor.u32 %v739, 2147483648
        %v773 = vxor.u32 %v699, 2147483648
        %v774 = vxor.u32 %v742, 2147483648
        %v775 = vxor.u32 %v701, 2147483648
        %v776 = vxor.u32 %v744, 2147483648
        %v777 = vxor.u32 %v704, 2147483648
        %v778 = vxor.u32 %v747, 2147483648
        %v779 = vxor.u32 %v706, 2147483648
        %v780 = vxor.u32 %v749, 2147483648
        %v781 = vxor.u32 %v709, 2147483648
        %v782 = vxor.u32 %v752, 2147483648
        %v783 = vxor.u32 %v711, 2147483648
        %v784 = vxor.u32 %v754, 2147483648
        %v785 = vxor.u32 %v714, 2147483648
        %v786 = vxor.u32 %v757, 2147483648
        %v787 = vxor.u32 %v716, 2147483648
        %v788 = vxor.u32 %v759, 2147483648
        %v789 = vxor.u32 %v719, 2147483648
        %v790 = vxor.u32 %v762, 2147483648
        %v791 = vmul.f32 %v765, 1.442695
        %v792 = vpow.pop %v791
        %v793 = vmul.f32 %v766, 1.442695
        %v794 = vpow.pop %v793
        %v795 = vmul.f32 %v767, 1.442695
        %v796 = vpow.pop %v795
        %v797 = vmul.f32 %v768, 1.442695
        %v798 = vpow.pop %v797
        %v799 = vmul.f32 %v769, 1.442695
        %v800 = vpow.pop %v799
        %v801 = vmul.f32 %v770, 1.442695
        %v802 = vpow.pop %v801
        %v803 = vmul.f32 %v771, 1.442695
        %v804 = vpow.pop %v803
        %v805 = vmul.f32 %v772, 1.442695
        %v806 = vpow.pop %v805
        %v807 = vmul.f32 %v773, 1.442695
        %v808 = vpow.pop %v807
        %v809 = vmul.f32 %v774, 1.442695
        %v810 = vpow.pop %v809
        %v811 = vmul.f32 %v775, 1.442695
        %v812 = vpow.pop %v811
        %v813 = vmul.f32 %v776, 1.442695
        %v814 = vpow.pop %v813
        %v815 = vmul.f32 %v777, 1.442695
        %v816 = vpow.pop %v815
        %v817 = vmul.f32 %v778, 1.442695
        %v818 = vpow.pop %v817
        %v819 = vmul.f32 %v779, 1.442695
        %v820 = vpow.pop %v819
        %v821 = vmul.f32 %v780, 1.442695
        %v822 = vpow.pop %v821
        %v823 = vmul.f32 %v781, 1.442695
        %v824 = vpow.pop %v823
        %v825 = vmul.f32 %v782, 1.442695
        %v826 = vpow.pop %v825
        %v827 = vmul.f32 %v783, 1.442695
        %v828 = vpow.pop %v827
        %v829 = vmul.f32 %v784, 1.442695
        %v830 = vpow.pop %v829
        %v831 = vmul.f32 %v785, 1.442695
        %v832 = vpow.pop %v831
        %v833 = vmul.f32 %v786, 1.442695
        %v834 = vpow.pop %v833
        %v835 = vmul.f32 %v787, 1.442695
        %v836 = vpow.pop %v835
        %v837 = vmul.f32 %v788, 1.442695
        %v838 = vpow.pop %v837
        %v839 = vmul.f32 %v789, 1.442695
        %v840 = vpow.pop %v839
        %v841 = vmul.f32 %v790, 1.442695
        %v842 = vpow.pop %v841
        %v843 = vadd.f32 %v792, 1.0
        %v844 = vadd.f32 %v794, 1.0
        %v845 = vadd.f32 %v796, 1.0
        %v846 = vadd.f32 %v798, 1.0
        %v847 = vadd.f32 %v800, 1.0
        %v848 = vadd.f32 %v802, 1.0
        %v849 = vadd.f32 %v804, 1.0
        %v850 = vadd.f32 %v806, 1.0
        %v851 = vadd.f32 %v808, 1.0
        %v852 = vadd.f32 %v810, 1.0
        %v853 = vadd.f32 %v812, 1.0
        %v854 = vadd.f32 %v814, 1.0
        %v855 = vadd.f32 %v816, 1.0
        %v856 = vadd.f32 %v818, 1.0
        %v857 = vadd.f32 %v820, 1.0
        %v858 = vadd.f32 %v822, 1.0
        %v859 = vadd.f32 %v824, 1.0
        %v860 = vadd.f32 %v826, 1.0
        %v861 = vadd.f32 %v828, 1.0
        %v862 = vadd.f32 %v830, 1.0
        %v863 = vadd.f32 %v832, 1.0
        %v864 = vadd.f32 %v834, 1.0
        %v865 = vadd.f32 %v836, 1.0
        %v866 = vadd.f32 %v838, 1.0
        %v867 = vadd.f32 %v840, 1.0
        %v868 = vadd.f32 %v842, 1.0
        %v869 = vrcp.pop %v843
        %v870 = vmul.f32 %v843, %v869
        %v871 = vsub.f32 1.0, %v870
        %v872 = vmul.f32 %v869, %v871
        %v873 = vadd.f32 %v869, %v872
        %vm874 = vweird.f32 %v843
        %vm875 = vweird.f32 %v869
        %vm876 = vmor %vm874, %vm875
        %v877 = vsel %vm876, %v869, %v873
        %v878 = vand.u32 2147483647, %v843
        %vm879 = vcmp.eq.f32.partialorder %v878, 8.507059e+37
        %v880 = vand.u32 %v843, 2147483648
        %v881 = vor.u32 1.1754944e-38, %v880
        %v882 = vsel %vm879, %v881, %v877
        %v883 = vmul.f32 1.0, %v882
        %v884 = vrcp.pop %v844
        %v885 = vmul.f32 %v844, %v884
        %v886 = vsub.f32 1.0, %v885
        %v887 = vmul.f32 %v884, %v886
        %v888 = vadd.f32 %v884, %v887
        %vm889 = vweird.f32 %v844
        %vm890 = vweird.f32 %v884
        %vm891 = vmor %vm889, %vm890
        %v892 = vsel %vm891, %v884, %v888
        %v893 = vand.u32 2147483647, %v844
        %vm894 = vcmp.eq.f32.partialorder %v893, 8.507059e+37
        %v895 = vand.u32 %v844, 2147483648
        %v896 = vor.u32 1.1754944e-38, %v895
        %v897 = vsel %vm894, %v896, %v892
        %v898 = vmul.f32 1.0, %v897
        %v899 = vrcp.pop %v845
        %v900 = vmul.f32 %v845, %v899
        %v901 = vsub.f32 1.0, %v900
        %v902 = vmul.f32 %v899, %v901
        %v903 = vadd.f32 %v899, %v902
        %vm904 = vweird.f32 %v845
        %vm905 = vweird.f32 %v899
        %vm906 = vmor %vm904, %vm905
        %v907 = vsel %vm906, %v899, %v903
        %v908 = vand.u32 2147483647, %v845
        %vm909 = vcmp.eq.f32.partialorder %v908, 8.507059e+37
        %v910 = vand.u32 %v845, 2147483648
        %v911 = vor.u32 1.1754944e-38, %v910
        %v912 = vsel %vm909, %v911, %v907
        %v913 = vmul.f32 1.0, %v912
        %v914 = vrcp.pop %v846
        %v915 = vmul.f32 %v846, %v914
        %v916 = vsub.f32 1.0, %v915
        %v917 = vmul.f32 %v914, %v916
        %v918 = vadd.f32 %v914, %v917
        %vm919 = vweird.f32 %v846
        %vm920 = vweird.f32 %v914
        %vm921 = vmor %vm919, %vm920
        %v922 = vsel %vm921, %v914, %v918
        %v923 = vand.u32 2147483647, %v846
        %vm924 = vcmp.eq.f32.partialorder %v923, 8.507059e+37
        %v925 = vand.u32 %v846, 2147483648
        %v926 = vor.u32 1.1754944e-38, %v925
        %v927 = vsel %vm924, %v926, %v922
        %v928 = vmul.f32 1.0, %v927
        %v929 = vrcp.pop %v847
        %v930 = vmul.f32 %v847, %v929
        %v931 = vsub.f32 1.0, %v930
        %v932 = vmul.f32 %v929, %v931
        %v933 = vadd.f32 %v929, %v932
        %vm934 = vweird.f32 %v847
        %vm935 = vweird.f32 %v929
        %vm936 = vmor %vm934, %vm935
        %v937 = vsel %vm936, %v929, %v933
        %v938 = vand.u32 2147483647, %v847
        %vm939 = vcmp.eq.f32.partialorder %v938, 8.507059e+37
        %v940 = vand.u32 %v847, 2147483648
        %v941 = vor.u32 1.1754944e-38, %v940
        %v942 = vsel %vm939, %v941, %v937
        %v943 = vmul.f32 1.0, %v942
        %v944 = vrcp.pop %v848
        %v945 = vmul.f32 %v848, %v944
        %v946 = vsub.f32 1.0, %v945
        %v947 = vmul.f32 %v944, %v946
        %v948 = vadd.f32 %v944, %v947
        %vm949 = vweird.f32 %v848
        %vm950 = vweird.f32 %v944
        %vm951 = vmor %vm949, %vm950
        %v952 = vsel %vm951, %v944, %v948
        %v953 = vand.u32 2147483647, %v848
        %vm954 = vcmp.eq.f32.partialorder %v953, 8.507059e+37
        %v955 = vand.u32 %v848, 2147483648
        %v956 = vor.u32 1.1754944e-38, %v955
        %v957 = vsel %vm954, %v956, %v952
        %v958 = vmul.f32 1.0, %v957
        %v959 = vrcp.pop %v849
        %v960 = vmul.f32 %v849, %v959
        %v961 = vsub.f32 1.0, %v960
        %v962 = vmul.f32 %v959, %v961
        %v963 = vadd.f32 %v959, %v962
        %vm964 = vweird.f32 %v849
        %vm965 = vweird.f32 %v959
        %vm966 = vmor %vm964, %vm965
        %v967 = vsel %vm966, %v959, %v963
        %v968 = vand.u32 2147483647, %v849
        %vm969 = vcmp.eq.f32.partialorder %v968, 8.507059e+37
        %v970 = vand.u32 %v849, 2147483648
        %v971 = vor.u32 1.1754944e-38, %v970
        %v972 = vsel %vm969, %v971, %v967
        %v973 = vmul.f32 1.0, %v972
        %v974 = vrcp.pop %v850
        %v975 = vmul.f32 %v850, %v974
        %v976 = vsub.f32 1.0, %v975
        %v977 = vmul.f32 %v974, %v976
        %v978 = vadd.f32 %v974, %v977
        %vm979 = vweird.f32 %v850
        %vm980 = vweird.f32 %v974
        %vm981 = vmor %vm979, %vm980
        %v982 = vsel %vm981, %v974, %v978
        %v983 = vand.u32 2147483647, %v850
        %vm984 = vcmp.eq.f32.partialorder %v983, 8.507059e+37
        %v985 = vand.u32 %v850, 2147483648
        %v986 = vor.u32 1.1754944e-38, %v985
        %v987 = vsel %vm984, %v986, %v982
        %v988 = vmul.f32 1.0, %v987
        %v989 = vrcp.pop %v851
        %v990 = vmul.f32 %v851, %v989
        %v991 = vsub.f32 1.0, %v990
        %v992 = vmul.f32 %v989, %v991
        %v993 = vadd.f32 %v989, %v992
        %vm994 = vweird.f32 %v851
        %vm995 = vweird.f32 %v989
        %vm996 = vmor %vm994, %vm995
        %v997 = vsel %vm996, %v989, %v993
        %v998 = vand.u32 2147483647, %v851
        %vm999 = vcmp.eq.f32.partialorder %v998, 8.507059e+37
        %v1000 = vand.u32 %v851, 2147483648
        %v1001 = vor.u32 1.1754944e-38, %v1000
        %v1002 = vsel %vm999, %v1001, %v997
        %v1003 = vmul.f32 1.0, %v1002
        %v1004 = vrcp.pop %v852
        %v1005 = vmul.f32 %v852, %v1004
        %v1006 = vsub.f32 1.0, %v1005
        %v1007 = vmul.f32 %v1004, %v1006
        %v1008 = vadd.f32 %v1004, %v1007
        %vm1009 = vweird.f32 %v852
        %vm1010 = vweird.f32 %v1004
        %vm1011 = vmor %vm1009, %vm1010
        %v1012 = vsel %vm1011, %v1004, %v1008
        %v1013 = vand.u32 2147483647, %v852
        %vm1014 = vcmp.eq.f32.partialorder %v1013, 8.507059e+37
        %v1015 = vand.u32 %v852, 2147483648
        %v1016 = vor.u32 1.1754944e-38, %v1015
        %v1017 = vsel %vm1014, %v1016, %v1012
        %v1018 = vmul.f32 1.0, %v1017
        %v1019 = vrcp.pop %v853
        %v1020 = vmul.f32 %v853, %v1019
        %v1021 = vsub.f32 1.0, %v1020
        %v1022 = vmul.f32 %v1019, %v1021
        %v1023 = vadd.f32 %v1019, %v1022
        %vm1024 = vweird.f32 %v853
        %vm1025 = vweird.f32 %v1019
        %vm1026 = vmor %vm1024, %vm1025
        %v1027 = vsel %vm1026, %v1019, %v1023
        %v1028 = vand.u32 2147483647, %v853
        %vm1029 = vcmp.eq.f32.partialorder %v1028, 8.507059e+37
        %v1030 = vand.u32 %v853, 2147483648
        %v1031 = vor.u32 1.1754944e-38, %v1030
        %v1032 = vsel %vm1029, %v1031, %v1027
        %v1033 = vmul.f32 1.0, %v1032
        %v1034 = vrcp.pop %v854
        %v1035 = vmul.f32 %v854, %v1034
        %v1036 = vsub.f32 1.0, %v1035
        %v1037 = vmul.f32 %v1034, %v1036
        %v1038 = vadd.f32 %v1034, %v1037
        %vm1039 = vweird.f32 %v854
        %vm1040 = vweird.f32 %v1034
        %vm1041 = vmor %vm1039, %vm1040
        %v1042 = vsel %vm1041, %v1034, %v1038
        %v1043 = vand.u32 2147483647, %v854
        %vm1044 = vcmp.eq.f32.partialorder %v1043, 8.507059e+37
        %v1045 = vand.u32 %v854, 2147483648
        %v1046 = vor.u32 1.1754944e-38, %v1045
        %v1047 = vsel %vm1044, %v1046, %v1042
        %v1048 = vmul.f32 1.0, %v1047
        %v1049 = vrcp.pop %v855
        %v1050 = vmul.f32 %v855, %v1049
        %v1051 = vsub.f32 1.0, %v1050
        %v1052 = vmul.f32 %v1049, %v1051
        %v1053 = vadd.f32 %v1049, %v1052
        %vm1054 = vweird.f32 %v855
        %vm1055 = vweird.f32 %v1049
        %vm1056 = vmor %vm1054, %vm1055
        %v1057 = vsel %vm1056, %v1049, %v1053
        %v1058 = vand.u32 2147483647, %v855
        %vm1059 = vcmp.eq.f32.partialorder %v1058, 8.507059e+37
        %v1060 = vand.u32 %v855, 2147483648
        %v1061 = vor.u32 1.1754944e-38, %v1060
        %v1062 = vsel %vm1059, %v1061, %v1057
        %v1063 = vmul.f32 1.0, %v1062
        %v1064 = vrcp.pop %v856
        %v1065 = vmul.f32 %v856, %v1064
        %v1066 = vsub.f32 1.0, %v1065
        %v1067 = vmul.f32 %v1064, %v1066
        %v1068 = vadd.f32 %v1064, %v1067
        %vm1069 = vweird.f32 %v856
        %vm1070 = vweird.f32 %v1064
        %vm1071 = vmor %vm1069, %vm1070
        %v1072 = vsel %vm1071, %v1064, %v1068
        %v1073 = vand.u32 2147483647, %v856
        %vm1074 = vcmp.eq.f32.partialorder %v1073, 8.507059e+37
        %v1075 = vand.u32 %v856, 2147483648
        %v1076 = vor.u32 1.1754944e-38, %v1075
        %v1077 = vsel %vm1074, %v1076, %v1072
        %v1078 = vmul.f32 1.0, %v1077
        %v1079 = vrcp.pop %v857
        %v1080 = vmul.f32 %v857, %v1079
        %v1081 = vsub.f32 1.0, %v1080
        %v1082 = vmul.f32 %v1079, %v1081
        %v1083 = vadd.f32 %v1079, %v1082
        %vm1084 = vweird.f32 %v857
        %vm1085 = vweird.f32 %v1079
        %vm1086 = vmor %vm1084, %vm1085
        %v1087 = vsel %vm1086, %v1079, %v1083
        %v1088 = vand.u32 2147483647, %v857
        %vm1089 = vcmp.eq.f32.partialorder %v1088, 8.507059e+37
        %v1090 = vand.u32 %v857, 2147483648
        %v1091 = vor.u32 1.1754944e-38, %v1090
        %v1092 = vsel %vm1089, %v1091, %v1087
        %v1093 = vmul.f32 1.0, %v1092
        %v1094 = vrcp.pop %v858
        %v1095 = vmul.f32 %v858, %v1094
        %v1096 = vsub.f32 1.0, %v1095
        %v1097 = vmul.f32 %v1094, %v1096
        %v1098 = vadd.f32 %v1094, %v1097
        %vm1099 = vweird.f32 %v858
        %vm1100 = vweird.f32 %v1094
        %vm1101 = vmor %vm1099, %vm1100
        %v1102 = vsel %vm1101, %v1094, %v1098
        %v1103 = vand.u32 2147483647, %v858
        %vm1104 = vcmp.eq.f32.partialorder %v1103, 8.507059e+37
        %v1105 = vand.u32 %v858, 2147483648
        %v1106 = vor.u32 1.1754944e-38, %v1105
        %v1107 = vsel %vm1104, %v1106, %v1102
        %v1108 = vmul.f32 1.0, %v1107
        %v1109 = vrcp.pop %v859
        %v1110 = vmul.f32 %v859, %v1109
        %v1111 = vsub.f32 1.0, %v1110
        %v1112 = vmul.f32 %v1109, %v1111
        %v1113 = vadd.f32 %v1109, %v1112
        %vm1114 = vweird.f32 %v859
        %vm1115 = vweird.f32 %v1109
        %vm1116 = vmor %vm1114, %vm1115
        %v1117 = vsel %vm1116, %v1109, %v1113
        %v1118 = vand.u32 2147483647, %v859
        %vm1119 = vcmp.eq.f32.partialorder %v1118, 8.507059e+37
        %v1120 = vand.u32 %v859, 2147483648
        %v1121 = vor.u32 1.1754944e-38, %v1120
        %v1122 = vsel %vm1119, %v1121, %v1117
        %v1123 = vmul.f32 1.0, %v1122
        %v1124 = vrcp.pop %v860
        %v1125 = vmul.f32 %v860, %v1124
        %v1126 = vsub.f32 1.0, %v1125
        %v1127 = vmul.f32 %v1124, %v1126
        %v1128 = vadd.f32 %v1124, %v1127
        %vm1129 = vweird.f32 %v860
        %vm1130 = vweird.f32 %v1124
        %vm1131 = vmor %vm1129, %vm1130
        %v1132 = vsel %vm1131, %v1124, %v1128
        %v1133 = vand.u32 2147483647, %v860
        %vm1134 = vcmp.eq.f32.partialorder %v1133, 8.507059e+37
        %v1135 = vand.u32 %v860, 2147483648
        %v1136 = vor.u32 1.1754944e-38, %v1135
        %v1137 = vsel %vm1134, %v1136, %v1132
        %v1138 = vmul.f32 1.0, %v1137
        %v1139 = vrcp.pop %v861
        %v1140 = vmul.f32 %v861, %v1139
        %v1141 = vsub.f32 1.0, %v1140
        %v1142 = vmul.f32 %v1139, %v1141
        %v1143 = vadd.f32 %v1139, %v1142
        %vm1144 = vweird.f32 %v861
        %vm1145 = vweird.f32 %v1139
        %vm1146 = vmor %vm1144, %vm1145
        %v1147 = vsel %vm1146, %v1139, %v1143
        %v1148 = vand.u32 2147483647, %v861
        %vm1149 = vcmp.eq.f32.partialorder %v1148, 8.507059e+37
        %v1150 = vand.u32 %v861, 2147483648
        %v1151 = vor.u32 1.1754944e-38, %v1150
        %v1152 = vsel %vm1149, %v1151, %v1147
        %v1153 = vmul.f32 1.0, %v1152
        %v1154 = vrcp.pop %v862
        %v1155 = vmul.f32 %v862, %v1154
        %v1156 = vsub.f32 1.0, %v1155
        %v1157 = vmul.f32 %v1154, %v1156
        %v1158 = vadd.f32 %v1154, %v1157
        %vm1159 = vweird.f32 %v862
        %vm1160 = vweird.f32 %v1154
        %vm1161 = vmor %vm1159, %vm1160
        %v1162 = vsel %vm1161, %v1154, %v1158
        %v1163 = vand.u32 2147483647, %v862
        %vm1164 = vcmp.eq.f32.partialorder %v1163, 8.507059e+37
        %v1165 = vand.u32 %v862, 2147483648
        %v1166 = vor.u32 1.1754944e-38, %v1165
        %v1167 = vsel %vm1164, %v1166, %v1162
        %v1168 = vmul.f32 1.0, %v1167
        %v1169 = vrcp.pop %v863
        %v1170 = vmul.f32 %v863, %v1169
        %v1171 = vsub.f32 1.0, %v1170
        %v1172 = vmul.f32 %v1169, %v1171
        %v1173 = vadd.f32 %v1169, %v1172
        %vm1174 = vweird.f32 %v863
        %vm1175 = vweird.f32 %v1169
        %vm1176 = vmor %vm1174, %vm1175
        %v1177 = vsel %vm1176, %v1169, %v1173
        %v1178 = vand.u32 2147483647, %v863
        %vm1179 = vcmp.eq.f32.partialorder %v1178, 8.507059e+37
        %v1180 = vand.u32 %v863, 2147483648
        %v1181 = vor.u32 1.1754944e-38, %v1180
        %v1182 = vsel %vm1179, %v1181, %v1177
        %v1183 = vmul.f32 1.0, %v1182
        %v1184 = vrcp.pop %v864
        %v1185 = vmul.f32 %v864, %v1184
        %v1186 = vsub.f32 1.0, %v1185
        %v1187 = vmul.f32 %v1184, %v1186
        %v1188 = vadd.f32 %v1184, %v1187
        %vm1189 = vweird.f32 %v864
        %vm1190 = vweird.f32 %v1184
        %vm1191 = vmor %vm1189, %vm1190
        %v1192 = vsel %vm1191, %v1184, %v1188
        %v1193 = vand.u32 2147483647, %v864
        %vm1194 = vcmp.eq.f32.partialorder %v1193, 8.507059e+37
        %v1195 = vand.u32 %v864, 2147483648
        %v1196 = vor.u32 1.1754944e-38, %v1195
        %v1197 = vsel %vm1194, %v1196, %v1192
        %v1198 = vmul.f32 1.0, %v1197
        %v1199 = vrcp.pop %v865
        %v1200 = vmul.f32 %v865, %v1199
        %v1201 = vsub.f32 1.0, %v1200
        %v1202 = vmul.f32 %v1199, %v1201
        %v1203 = vadd.f32 %v1199, %v1202
        %vm1204 = vweird.f32 %v865
        %vm1205 = vweird.f32 %v1199
        %vm1206 = vmor %vm1204, %vm1205
        %v1207 = vsel %vm1206, %v1199, %v1203
        %v1208 = vand.u32 2147483647, %v865
        %vm1209 = vcmp.eq.f32.partialorder %v1208, 8.507059e+37
        %v1210 = vand.u32 %v865, 2147483648
        %v1211 = vor.u32 1.1754944e-38, %v1210
        %v1212 = vsel %vm1209, %v1211, %v1207
        %v1213 = vmul.f32 1.0, %v1212
        %v1214 = vrcp.pop %v866
        %v1215 = vmul.f32 %v866, %v1214
        %v1216 = vsub.f32 1.0, %v1215
        %v1217 = vmul.f32 %v1214, %v1216
        %v1218 = vadd.f32 %v1214, %v1217
        %vm1219 = vweird.f32 %v866
        %vm1220 = vweird.f32 %v1214
        %vm1221 = vmor %vm1219, %vm1220
        %v1222 = vsel %vm1221, %v1214, %v1218
        %v1223 = vand.u32 2147483647, %v866
        %vm1224 = vcmp.eq.f32.partialorder %v1223, 8.507059e+37
        %v1225 = vand.u32 %v866, 2147483648
        %v1226 = vor.u32 1.1754944e-38, %v1225
        %v1227 = vsel %vm1224, %v1226, %v1222
        %v1228 = vmul.f32 1.0, %v1227
        %v1229 = vrcp.pop %v867
        %v1230 = vmul.f32 %v867, %v1229
        %v1231 = vsub.f32 1.0, %v1230
        %v1232 = vmul.f32 %v1229, %v1231
        %v1233 = vadd.f32 %v1229, %v1232
        %vm1234 = vweird.f32 %v867
        %vm1235 = vweird.f32 %v1229
        %vm1236 = vmor %vm1234, %vm1235
        %v1237 = vsel %vm1236, %v1229, %v1233
        %v1238 = vand.u32 2147483647, %v867
        %vm1239 = vcmp.eq.f32.partialorder %v1238, 8.507059e+37
        %v1240 = vand.u32 %v867, 2147483648
        %v1241 = vor.u32 1.1754944e-38, %v1240
        %v1242 = vsel %vm1239, %v1241, %v1237
        %v1243 = vmul.f32 1.0, %v1242
        %v1244 = vrcp.pop %v868
        %v1245 = vmul.f32 %v868, %v1244
        %v1246 = vsub.f32 1.0, %v1245
        %v1247 = vmul.f32 %v1244, %v1246
        %v1248 = vadd.f32 %v1244, %v1247
        %vm1249 = vweird.f32 %v868
        %vm1250 = vweird.f32 %v1244
        %vm1251 = vmor %vm1249, %vm1250
        %v1252 = vsel %vm1251, %v1244, %v1248
        %v1253 = vand.u32 2147483647, %v868
        %vm1254 = vcmp.eq.f32.partialorder %v1253, 8.507059e+37
        %v1255 = vand.u32 %v868, 2147483648
        %v1256 = vor.u32 1.1754944e-38, %v1255
        %v1257 = vsel %vm1254, %v1256, %v1252
        %v1258 = vmul.f32 1.0, %v1257
        %v1259 = vpack.c.bf16 %v898, %v883
        %v1260 = vpack.c.bf16 %v928, %v913
        %v1261 = vpack.c.bf16 %v958, %v943
        %v1262 = vpack.c.bf16 %v988, %v973
        %v1263 = vpack.c.bf16 %v1018, %v1003
        %v1264 = vpack.c.bf16 %v1048, %v1033
        %v1265 = vpack.c.bf16 %v1078, %v1063
        %v1266 = vpack.c.bf16 %v1108, %v1093
        %v1267 = vpack.c.bf16 %v1138, %v1123
        %v1268 = vpack.c.bf16 %v1168, %v1153
        %v1269 = vpack.c.bf16 %v1198, %v1183
        %v1270 = vpack.c.bf16 %v1228, %v1213
        %v1271 = vpack.c.bf16 %v1258, %v1243
        %1272 = vst [vmem:[%s286] sm:$0xff] %v1259
        %1273 = vst [vmem:[%s286 + $0x8] sm:$0xff] %v1260
        %1274 = vst [vmem:[%s286 + $0x10] sm:$0xff] %v1261
        %1275 = vst [vmem:[%s286 + $0x18] sm:$0xff] %v1262
        %1276 = vst [vmem:[%s286 + $0x20] sm:$0xff] %v1263
        %1277 = vst [vmem:[%s286 + $0x28] sm:$0xff] %v1264
        %1278 = vst [vmem:[%s286 + $0x30] sm:$0xff] %v1265
        %1279 = vst [vmem:[%s286 + $0x38] sm:$0xff] %v1266
        %1280 = vst [vmem:[%s286 + $0x40] sm:$0xff] %v1267
        %1281 = vst [vmem:[%s286 + $0x48] sm:$0xff] %v1268
        %1282 = vst [vmem:[%s286 + $0x50] sm:$0xff] %v1269
        %1283 = vst [vmem:[%s286 + $0x58] sm:$0xff] %v1270
        %1284 = vst [vmem:[%s286 + $0x60] sm:$0xff] %v1271
        %s1285 = sand.u32 %s141, 1
        %s1286 = scalar_lea.sflag [#allocation4], %s1285
        %s1287 = sand.u32 %s141, 1
        %s1288 = smul.addr %s1287, 104
        %s1289 = scalar_lea.vmem [#allocation8], %s1288
        // Predicated region
        $region53: #{tpu_custom_call.1} parent=39 // pred_check
          %p1290 = pneg %p151
        $region54: #{tpu_custom_call.1} parent=39 // pred_check_branch
          %1292 = sbr.rel (%p1290) target = $region56
        $region55: #{tpu_custom_call.1} parent=39 // pred_region
          %s1293 = smul.u32 13, %s23
          %s1294 = ssub.s32 25, %s1293
          %p1295 = scmp.lt.s32.totalorder %s1294, 13
          %s1296 = scalar_select %p1295, %s1294, 13
          %s1297 = smul.u32 4, %s1296
          %s1298 = smul.u32 %s1297, 2
          %s1299 = ssub.s32 104, %s1298
          %s1300 = sshll.u32 %s1299, 4
          %1301 = vsyncadd %s1286, %s1300
          %p1302 = scmp.ne.s32.totalorder 0, %s1298
          %s1303 = smul.addr %s1293, 2
          %s1304 = smul.addr %s1303, 4
          %s1305 = scalar_lea.hbm %s5, %s1304
          %s1306 = smul.u32 8, %s1296
          %s1307 = sshll.u32 %s1289, 4
          %s1308 = int_to_ptr.vmem [resolvable:$true] %s1307
          %s1309 = sshll.u32 %s1305, 4
          %s1310 = int_to_ptr.hbm [resolvable:$true] %s1309
          %s1311 = sshll.u32 %s1306, 4
          %1315 = dma.vmem_to_hbm [thread:$0]  (%p1302), %s1308, %s1311, %s1310, %s1286, 128, 128, 8
        $region56: #{tpu_custom_call.1} parent=39 // pred_fallthru
          _
      $region40: #{tpu_custom_call.1} parent=5 // pred_fallthru
        _
      %p1316 = scmp.le.s32.totalorder 2, %s18
      // Predicated region
      $region57: #{tpu_custom_call.1} parent=5 // pred_check
        %p1317 = pneg %p1316
      $region58: #{tpu_custom_call.1} parent=5 // pred_check_branch
        %1319 = sbr.rel (%p1317) target = $region60
      $region59: #{tpu_custom_call.1} parent=5 // pred_region
        %s1320 = ssub.s32 %s18, 2
        // Predicated region
        $region61: #{tpu_custom_call.1} parent=59 // pred_check
          %p1321 = pneg %p157
        $region62: #{tpu_custom_call.1} parent=59 // pred_check_branch
          %1323 = sbr.rel (%p1321) target = $region64
        $region63: #{tpu_custom_call.1} parent=59 // pred_region
          %s1324 = sand.u32 %s142, 1
          %s1325 = scalar_lea.sflag [#allocation4], %s1324
          %s1326 = sand.u32 %s142, 1
          %s1327 = smul.addr %s1326, 104
          %s1328 = scalar_lea.vmem [#allocation8], %s1327
          %1330 = dma.done %s1325, 1664
        $region64: #{tpu_custom_call.1} parent=59 // pred_fallthru
          _
      $region60: #{tpu_custom_call.1} parent=5 // pred_fallthru
        _
    $region6: #{tpu_custom_call.1} parent=1 // loop_footer
      %s22 = sadd.s32 1, %s18
    $region7: #{tpu_custom_call.1} parent=1 // loop_footer_branch
      %17 = sbr.rel target = $region3
    $region8: #{tpu_custom_call.1} parent=1 // loop_exit
      _
    %1331 = vsyncpa [#allocation3], 1
    %s1332 = scalar_lea.sflag [#allocation3], 1
    %1333 = vsyncpa %s1332, 1
    %1334 = vsyncpa [#allocation6], 1
    %1335 = vsyncpa [#allocation4], 1
    %s1336 = scalar_lea.sflag [#allocation4], 1
    %1337 = vsyncpa %s1336, 1

</llo_original>
